<compile_context>
chip_gen: v5e
topology: v5e:2x2
jax: 0.10.0
libtpu: 0.0.40
codegen_flags: <defaults>
</compile_context>

<pallas_src>
import functools

import jax
import jax.numpy as jnp
import numpy as np
from jax.experimental import pallas as pl
from jax.experimental.pallas import tpu as pltpu


def _focal_kernel(x_ref, t_ref, acc_a_ref, acc_b_ref, *,
                  hw, ts, nj, num_class, gamma, eps, alpha,
                  need_mask, mask_from_blk):
    s = pl.program_id(1)
    j = pl.program_id(2)

    @pl.when(j == 0)
    def _():
        acc_a_ref[...] = jnp.zeros_like(acc_a_ref)
        acc_b_ref[...] = jnp.zeros_like(acc_b_ref)

    t = t_ref[0]                                        # (ts, 128) int targets

    if num_class == 2:
        # Binary specialization: softmax prob of the target class equals
        # sigmoid(x_target - x_other): one exp + one exact EUP reciprocal,
        # no class max / sum-over-classes.
        x0 = x_ref[0, 0].astype(jnp.float32)            # (ts, 128)
        x1 = x_ref[0, 1].astype(jnp.float32)
        d = x1 - x0
        is1 = t == 1
        z = jnp.where(is1, d, -d)                       # target-vs-other gap
        pt = pl.reciprocal(1.0 + jnp.exp(-z), approx=False) + eps
        # alpha[target] as a 2-op linear blend (alpha baked in at trace time)
        a_term = (jnp.float32(alpha[0])
                  + jnp.float32(alpha[1] - alpha[0]) * is1.astype(jnp.float32))
    else:
        # Generic small-C path: class axis handled as a Python loop of dense
        # (ts, 128) slabs reduced with plain elementwise max/add.
        xs = [x_ref[0, ci].astype(jnp.float32) for ci in range(num_class)]
        xmax = xs[0]
        for xc in xs[1:]:
            xmax = jnp.maximum(xmax, xc)
        denom = jnp.zeros_like(xmax)
        ex_t = jnp.zeros_like(xmax)
        for ci, xc in enumerate(xs):
            e = jnp.exp(xc - xmax)
            denom = denom + e
            ex_t = ex_t + jnp.where(t == ci, e, 0.0)
        pt = ex_t * pl.reciprocal(denom, approx=False) + eps
        a_term = jnp.zeros_like(pt)
        for ci, av in enumerate(alpha):
            a_term = a_term + jnp.where(t == ci, jnp.float32(av),
                                        jnp.float32(0.0))

    logpt = jnp.log(pt)
    one_m = 1.0 - pt
    g_int = int(gamma)
    if float(gamma) == float(g_int) and 0 <= g_int <= 8:
        # integer gamma: repeated multiply on the VPU (avoids pow -> exp/log)
        focal = jnp.ones_like(one_m)
        for _ in range(g_int):
            focal = focal * one_m
    else:
        focal = jnp.power(one_m, jnp.float32(gamma))
    b_term = -(focal * logpt)                           # (ts, 128)

    def _accumulate(a_v, b_v):
        # reduce over the sublane axis in-step -> tiny (1,1,1,128) accumulators
        acc_a_ref[...] = acc_a_ref[...] + jnp.sum(a_v, axis=0,
                                                  keepdims=True)[None, None]
        acc_b_ref[...] = acc_b_ref[...] + jnp.sum(b_v, axis=0,
                                                  keepdims=True)[None, None]

    if need_mask:
        blk = s * nj + j                                # global row-block index

        @pl.when(blk < mask_from_blk)
        def _():
            _accumulate(a_term, b_term)

        @pl.when(blk >= mask_from_blk)
        def _():
            # Only the tail / overflow block(s) pay for the mask arithmetic.
            base = blk * (ts * 128)
            row = jax.lax.broadcasted_iota(jnp.int32, (ts, 128), 0)
            lane = jax.lax.broadcasted_iota(jnp.int32, (ts, 128), 1)
            valid = (base + row * 128 + lane) < hw
            _accumulate(jnp.where(valid, a_term, 0.0),
                        jnp.where(valid, b_term, 0.0))
    else:
        _accumulate(a_term, b_term)


def focal_loss_pallas(x_nchw, target, alpha_vec, *, gamma=2.0, eps=1e-10,
                      size_average=True, target_rows=512):
    """x_nchw: (N, C, H, W) float logits; target: (N, H, W) int; alpha_vec: (C,)."""
    n, c, h, w = x_nchw.shape
    hw = h * w
    cdiv = lambda a, b: (a + b - 1) // b
    round_up = lambda a, m: ((a + m - 1) // m) * m

    # Free contiguous view of NCHW as (N, C, R, 128); a padded copy is only
    # materialized when H*W is not a multiple of 128 (rare for image shapes).
    hw128 = round_up(hw, 128)
    x = x_nchw.reshape(n, c, hw)
    t = target.reshape(n, hw).astype(jnp.int32)
    if hw128 != hw:
        x = jnp.pad(x, ((0, 0), (0, 0), (0, hw128 - hw)))
        t = jnp.pad(t, ((0, 0), (0, hw128 - hw)))
    r = hw128 // 128
    x = x.reshape(n, c, r, 128)
    t = t.reshape(n, r, 128)

    # Row-tile (sublane) size: big tiles amortize per-step overhead; blocks are
    # tiny vs. VMEM so only a generous streaming budget caps them.
    vmem_budget = 10 * 1024 * 1024
    bytes_per_row = 2 * (c + 1) * 128 * 4           # double-buffered x + t
    ts = min(int(target_rows), r, max(1, vmem_budget // bytes_per_row))
    if r >= 8:
        ts = max(8, (ts // 8) * 8)
    else:
        ts = r

    nr = cdiv(r, ts)                                # total row-blocks per batch
    # v7x megacore: if N is 1 (or odd) split the HW range across a size-2
    # parallel axis so both TensorCores stay busy.
    n_split = 2 if (n % 2 == 1 and nr >= 2) else 1
    nj = cdiv(nr, n_split)
    clamp = (n_split * nj) > nr                     # duplicate (masked) blocks

    tile = ts * 128
    covered = n_split * nj * tile
    need_mask = covered > hw
    mask_from_blk = hw // tile

    def _blk(sp, j):
        b_idx = sp * nj + j
        if clamp:
            b_idx = jnp.minimum(b_idx, nr - 1)      # never fetch past the array
        return b_idx

    x_spec = pl.BlockSpec((1, c, ts, 128), lambda b, sp, j: (b, 0, _blk(sp, j), 0))
    t_spec = pl.BlockSpec((1, ts, 128), lambda b, sp, j: (b, _blk(sp, j), 0))
    oa_spec = pl.BlockSpec((1, 1, 1, 128), lambda b, sp, j: (b, sp, 0, 0))
    ob_spec = pl.BlockSpec((1, 1, 1, 128), lambda b, sp, j: (b, sp, 0, 0))

    alpha_tuple = tuple(float(v) for v in
                        np.asarray(jax.device_get(alpha_vec)).reshape(-1))
    assert len(alpha_tuple) == c

    kernel = functools.partial(
        _focal_kernel, hw=hw, ts=ts, nj=nj, num_class=c,
        gamma=float(gamma), eps=float(eps), alpha=alpha_tuple,
        need_mask=need_mask, mask_from_blk=mask_from_blk)

    cost = pl.CostEstimate(
        flops=20 * n * hw,
        transcendentals=(2 if c == 2 else c + 1) * n * hw,
        bytes_accessed=n * c * hw * 4 + n * hw * 4 + 2 * n * n_split * 128 * 4)

    out_a, out_b = pl.pallas_call(
        kernel,
        out_shape=(jax.ShapeDtypeStruct((n, n_split, 1, 128), jnp.float32),
                   jax.ShapeDtypeStruct((n, n_split, 1, 128), jnp.float32)),
        grid_spec=pltpu.PrefetchScalarGridSpec(
            num_scalar_prefetch=0,
            grid=(n, n_split, nj),
            in_specs=[x_spec, t_spec],
            out_specs=[oa_spec, ob_spec],
        ),
        compiler_params=pltpu.CompilerParams(
            dimension_semantics=("parallel", "parallel", "arbitrary"),
            vmem_limit_bytes=32 * 1024 * 1024),
        cost_estimate=cost,
    )(x, t)

    # Tiny epilogue reduction (lane-dense partials -> scalars).
    sum_a = jnp.sum(out_a)
    sum_b = jnp.sum(out_b)
    m = n * hw
    if size_average:
        # mean over the (M,1,M) broadcast tensor produced by the PyTorch code
        return sum_a * sum_b / jnp.float32(float(m) * float(m))
    return sum_a * sum_b


def _build_alpha(num_class=2, alpha=0.6, balance_index=0):
    # Mirrors Focal_loss.__init__ for a float alpha.
    a = np.ones((num_class,), np.float32) * (1.0 - alpha)
    a[balance_index] = alpha
    return jnp.asarray(a)


def _focal_loss_ref(x_nchw, target, alpha_vec, gamma=2.0, eps=1e-10):
    # Pure-JAX reference reproducing the PyTorch forward exactly.
    n, c, h, w = x_nchw.shape
    logit = jax.nn.softmax(x_nchw.astype(jnp.float32), axis=1)
    logit = jnp.transpose(logit, (0, 2, 3, 1)).reshape(-1, c)
    t = target.reshape(-1).astype(jnp.int32)
    pt = logit[jnp.arange(t.shape[0]), t] + eps
    b = -jnp.power(1.0 - pt, gamma) * jnp.log(pt)
    a = alpha_vec[t]
    # alpha broadcast quirk: result is (M,1,M); its mean = mean(a) * mean(b)
    return jnp.mean(a) * jnp.mean(b)


if __name__ == "__main__":
    key = jax.random.PRNGKey(0)
    kx, kt = jax.random.split(key)

    num_class = 2
    N, H, W = 2, 16, 16
    x = jax.random.normal(kx, (N, num_class, H, W), dtype=jnp.float32)
    target = jax.random.randint(kt, (N, H, W), 0, num_class, dtype=jnp.int32)
    alpha_vec = _build_alpha(num_class=num_class, alpha=0.6, balance_index=0)

    loss = focal_loss_pallas(x, target, alpha_vec, gamma=2.0, size_average=True)
    loss = jax.block_until_ready(loss)

    ref = jax.block_until_ready(_focal_loss_ref(x, target, alpha_vec, gamma=2.0))
    np.testing.assert_allclose(np.asarray(loss), np.asarray(ref),
                               rtol=1e-5, atol=1e-6)

    print("KERNEL_OK")
</pallas_src>

<mosaic_0001>
module attributes {stable_mosaic.version = 11 : i64} {
  func.func @_focal_kernel(%arg0: i32, %arg1: i32, %arg2: i32, %arg3: memref<1x2x2x128xf32, #tpu.memory_space<vmem>>, %arg4: memref<1x2x128xi32, #tpu.memory_space<vmem>>, %arg5: memref<1x1x1x128xf32, #tpu.memory_space<vmem>>, %arg6: memref<1x1x1x128xf32, #tpu.memory_space<vmem>>) attributes {dimension_semantics = [#tpu.dimension_semantics<parallel>, #tpu.dimension_semantics<parallel>, #tpu.dimension_semantics<arbitrary>], iteration_bounds = array<i64: 2, 1, 1>, scalar_prefetch = 0 : i64, scratch_operands = 0 : i64, tpu.core_type = #tpu.core_type<tc>, window_params = [{transform_indices = @transform_0, window_bounds = array<i64: 1, 2, 2, 128>}, {transform_indices = @transform_1, window_bounds = array<i64: 1, 2, 128>}, {transform_indices = @transform_2, window_bounds = array<i64: 1, 1, 1, 128>}, {transform_indices = @transform_3, window_bounds = array<i64: 1, 1, 1, 128>}]} {
    %c0_i32 = arith.constant 0 : i32
    %0 = arith.cmpi eq, %arg2, %c0_i32 : i32
    %1 = arith.extui %0 : i1 to i32
    %c0_i32_0 = arith.constant 0 : i32
    %2 = arith.cmpi ne, %1, %c0_i32_0 : i32
    scf.if %2 {
      %cst_36 = arith.constant 0.000000e+00 : f32
      %50 = vector.broadcast %cst_36 : f32 to vector<1x1x1x128xf32>
      %c0_37 = arith.constant 0 : index
      %c0_38 = arith.constant 0 : index
      %c0_39 = arith.constant 0 : index
      %c0_40 = arith.constant 0 : index
      %51 = vector.load %arg5[%c0_37, %c0_38, %c0_39, %c0_40] : memref<1x1x1x128xf32, #tpu.memory_space<vmem>>, vector<1x1x1x128xf32>
      tpu.vector_store %arg5[%c0_37, %c0_38, %c0_39, %c0_40], %50 {strides = array<i32>} : memref<1x1x1x128xf32, #tpu.memory_space<vmem>>, vector<1x1x1x128xf32>,
      %cst_41 = arith.constant 0.000000e+00 : f32
      %52 = vector.broadcast %cst_41 : f32 to vector<1x1x1x128xf32>
      %c0_42 = arith.constant 0 : index
      %c0_43 = arith.constant 0 : index
      %c0_44 = arith.constant 0 : index
      %c0_45 = arith.constant 0 : index
      %53 = vector.load %arg6[%c0_42, %c0_43, %c0_44, %c0_45] : memref<1x1x1x128xf32, #tpu.memory_space<vmem>>, vector<1x1x1x128xf32>
      tpu.vector_store %arg6[%c0_42, %c0_43, %c0_44, %c0_45], %52 {strides = array<i32>} : memref<1x1x1x128xf32, #tpu.memory_space<vmem>>, vector<1x1x1x128xf32>,
    } else {
    }
    %c0 = arith.constant 0 : index
    %c0_1 = arith.constant 0 : index
    %c0_2 = arith.constant 0 : index
    %3 = vector.load %arg4[%c0, %c0_1, %c0_2] : memref<1x2x128xi32, #tpu.memory_space<vmem>>, vector<1x2x128xi32>
    %4 = vector.shape_cast %3 : vector<1x2x128xi32> to vector<2x128xi32>
    %c0_3 = arith.constant 0 : index
    %c0_4 = arith.constant 0 : index
    %c0_5 = arith.constant 0 : index
    %c0_6 = arith.constant 0 : index
    %5 = vector.load %arg3[%c0_3, %c0_4, %c0_5, %c0_6] : memref<1x2x2x128xf32, #tpu.memory_space<vmem>>, vector<1x1x2x128xf32>
    %6 = vector.shape_cast %5 : vector<1x1x2x128xf32> to vector<2x128xf32>
    %c0_7 = arith.constant 0 : index
    %c1 = arith.constant 1 : index
    %c0_8 = arith.constant 0 : index
    %c0_9 = arith.constant 0 : index
    %7 = vector.load %arg3[%c0_7, %c1, %c0_8, %c0_9] : memref<1x2x2x128xf32, #tpu.memory_space<vmem>>, vector<1x1x2x128xf32>
    %8 = vector.shape_cast %7 : vector<1x1x2x128xf32> to vector<2x128xf32>
    %9 = arith.subf %8, %6 : vector<2x128xf32>
    %c1_i32 = arith.constant 1 : i32
    %10 = vector.broadcast %c1_i32 : i32 to vector<2x128xi32>
    %11 = arith.cmpi eq, %4, %10 : vector<2x128xi32>
    %cst = arith.constant 0.000000e+00 : f32
    %12 = vector.broadcast %cst : f32 to vector<2x128xf32>
    %13 = arith.subf %12, %9 : vector<2x128xf32>
    %14 = arith.select %11, %9, %13 : vector<2x128xi1>, vector<2x128xf32>
    %cst_10 = arith.constant 0.000000e+00 : f32
    %15 = vector.broadcast %cst_10 : f32 to vector<2x128xf32>
    %16 = arith.subf %15, %14 : vector<2x128xf32>
    %17 = math.exp %16 : vector<2x128xf32>
    %cst_11 = arith.constant 1.000000e+00 : f32
    %18 = vector.broadcast %cst_11 : f32 to vector<2x128xf32>
    %19 = arith.addf %18, %17 : vector<2x128xf32>
    %20 = tpu.reciprocal %19 : vector<2x128xf32> -> vector<2x128xf32>
    %cst_12 = arith.constant 1.000000e-10 : f32
    %21 = vector.broadcast %cst_12 : f32 to vector<2x128xf32>
    %22 = arith.addf %20, %21 : vector<2x128xf32>
    %23 = arith.extui %11 : vector<2x128xi1> to vector<2x128xi32>
    %24 = arith.sitofp %23 : vector<2x128xi32> to vector<2x128xf32>
    %cst_13 = arith.constant -0.200000018 : f32
    %25 = vector.broadcast %cst_13 : f32 to vector<2x128xf32>
    %26 = arith.mulf %25, %24 : vector<2x128xf32>
    %cst_14 = arith.constant 6.000000e-01 : f32
    %27 = vector.broadcast %cst_14 : f32 to vector<2x128xf32>
    %28 = arith.addf %27, %26 : vector<2x128xf32>
    %29 = math.log %22 : vector<2x128xf32>
    %cst_15 = arith.constant 1.000000e+00 : f32
    %30 = vector.broadcast %cst_15 : f32 to vector<2x128xf32>
    %31 = arith.subf %30, %22 : vector<2x128xf32>
    %cst_16 = arith.constant 1.000000e+00 : f32
    %32 = vector.broadcast %cst_16 : f32 to vector<2x128xf32>
    %33 = arith.mulf %32, %31 : vector<2x128xf32>
    %34 = arith.mulf %33, %31 : vector<2x128xf32>
    %35 = arith.mulf %34, %29 : vector<2x128xf32>
    %cst_17 = arith.constant 0.000000e+00 : f32
    %36 = vector.broadcast %cst_17 : f32 to vector<2x128xf32>
    %37 = arith.subf %36, %35 : vector<2x128xf32>
    %c0_18 = arith.constant 0 : index
    %c0_19 = arith.constant 0 : index
    %c0_20 = arith.constant 0 : index
    %c0_21 = arith.constant 0 : index
    %38 = vector.load %arg5[%c0_18, %c0_19, %c0_20, %c0_21] : memref<1x1x1x128xf32, #tpu.memory_space<vmem>>, vector<1x1x1x128xf32>
    %cst_22 = arith.constant dense<0.000000e+00> : vector<128xf32>
    %39 = vector.multi_reduction <add>, %28, %cst_22 [0] : vector<2x128xf32> to vector<128xf32>
    %40 = vector.shape_cast %39 : vector<128xf32> to vector<1x128xf32>
    %41 = vector.shape_cast %40 : vector<1x128xf32> to vector<1x1x1x128xf32>
    %42 = arith.addf %38, %41 : vector<1x1x1x128xf32>
    %c0_23 = arith.constant 0 : index
    %c0_24 = arith.constant 0 : index
    %c0_25 = arith.constant 0 : index
    %c0_26 = arith.constant 0 : index
    %43 = vector.load %arg5[%c0_23, %c0_24, %c0_25, %c0_26] : memref<1x1x1x128xf32, #tpu.memory_space<vmem>>, vector<1x1x1x128xf32>
    tpu.vector_store %arg5[%c0_23, %c0_24, %c0_25, %c0_26], %42 {strides = array<i32>} : memref<1x1x1x128xf32, #tpu.memory_space<vmem>>, vector<1x1x1x128xf32>,
    %c0_27 = arith.constant 0 : index
    %c0_28 = arith.constant 0 : index
    %c0_29 = arith.constant 0 : index
    %c0_30 = arith.constant 0 : index
    %44 = vector.load %arg6[%c0_27, %c0_28, %c0_29, %c0_30] : memref<1x1x1x128xf32, #tpu.memory_space<vmem>>, vector<1x1x1x128xf32>
    %cst_31 = arith.constant dense<0.000000e+00> : vector<128xf32>
    %45 = vector.multi_reduction <add>, %37, %cst_31 [0] : vector<2x128xf32> to vector<128xf32>
    %46 = vector.shape_cast %45 : vector<128xf32> to vector<1x128xf32>
    %47 = vector.shape_cast %46 : vector<1x128xf32> to vector<1x1x1x128xf32>
    %48 = arith.addf %44, %47 : vector<1x1x1x128xf32>
    %c0_32 = arith.constant 0 : index
    %c0_33 = arith.constant 0 : index
    %c0_34 = arith.constant 0 : index
    %c0_35 = arith.constant 0 : index
    %49 = vector.load %arg6[%c0_32, %c0_33, %c0_34, %c0_35] : memref<1x1x1x128xf32, #tpu.memory_space<vmem>>, vector<1x1x1x128xf32>
    tpu.vector_store %arg6[%c0_32, %c0_33, %c0_34, %c0_35], %48 {strides = array<i32>} : memref<1x1x1x128xf32, #tpu.memory_space<vmem>>, vector<1x1x1x128xf32>,
    return
  }
  func.func @transform_0(%arg0: i32, %arg1: i32, %arg2: i32) -> (i32, i32, i32, i32) {
    %c1_i32 = arith.constant 1 : i32
    %0 = arith.muli %arg1, %c1_i32 : i32
    %1 = arith.addi %0, %arg2 : i32
    %c0_i32 = arith.constant 0 : i32
    %c0_i32_0 = arith.constant 0 : i32
    %c0_i32_1 = arith.constant 0 : i32
    return %arg0, %c0_i32, %1, %c0_i32_0 : i32, i32, i32, i32
  }
  func.func @transform_1(%arg0: i32, %arg1: i32, %arg2: i32) -> (i32, i32, i32) {
    %c1_i32 = arith.constant 1 : i32
    %0 = arith.muli %arg1, %c1_i32 : i32
    %1 = arith.addi %0, %arg2 : i32
    %c0_i32 = arith.constant 0 : i32
    %c0_i32_0 = arith.constant 0 : i32
    return %arg0, %1, %c0_i32 : i32, i32, i32
  }
  func.func @transform_2(%arg0: i32, %arg1: i32, %arg2: i32) -> (i32, i32, i32, i32) {
    %c0_i32 = arith.constant 0 : i32
    %c0_i32_0 = arith.constant 0 : i32
    %c0_i32_1 = arith.constant 0 : i32
    return %arg0, %arg1, %c0_i32, %c0_i32_0 : i32, i32, i32, i32
  }
  func.func @transform_3(%arg0: i32, %arg1: i32, %arg2: i32) -> (i32, i32, i32, i32) {
    %c0_i32 = arith.constant 0 : i32
    %c0_i32_0 = arith.constant 0 : i32
    %c0_i32_1 = arith.constant 0 : i32
    return %arg0, %arg1, %c0_i32, %c0_i32_0 : i32, i32, i32, i32
  }
}

</mosaic_0001>

<llo_original>
// kernel: tpu_custom_call.1
$region0: #{tpu_custom_call.1}
  #allocation0 [shape = 'u32[]', space=smem, size = 0x4, offset = 0x4, fixed_abs, tag = 'smem constant byte address 0x4 - core index']
  #allocation1 [shape = 'u32[72,128]{1,0:T(1,128)}', space=vmem, size = 0x9000, scoped, tag = 'internal scratch']
  %s0 = inlined_call_operand.hbm [shape: f32[2,2,2,128], index: 0, kind: input, shape index: {}]
  %s1 = inlined_call_operand.hbm [shape: s32[2,2,128], index: 1, kind: input, shape index: {}]
  %s2 = inlined_call_operand.hbm [shape: f32[2,1,1,128], index: 2, kind: output, shape index: {0}]
  %s3 = inlined_call_operand.hbm [shape: f32[2,1,1,128], index: 3, kind: output, shape index: {1}]
  %4 = xla_tuple %s2, %s3
  %s5 = sld [smem:[#allocation0]]
  $region61: #{tpu_custom_call.1} parent=0
    _
  %s7 = ssub.s32 1, %s5
  %s8 = scalar_select 0, %s7, %s5
  $region1: #{tpu_custom_call.1} parent=0
    #allocation2 [shape = 'u8[4096]{0}', space=vmem, size = 0x1000, scoped, tag = 'input window, operand 0']
    #allocation3 [shape = 's32[2]{0}', space=sflag, size = 0x8, scoped, tag = 'scoped memory for tpu_custom_call.1']
    #allocation4 [shape = 's32[2]{0}', space=sflag, size = 0x8, scoped, tag = 'scoped memory for tpu_custom_call.1']
    #allocation5 [shape = 'u8[2048]{0}', space=vmem, size = 0x800, scoped, tag = 'input window, operand 1']
    #allocation6 [shape = 's32[2]{0}', space=sflag, size = 0x8, scoped, tag = 'scoped memory for tpu_custom_call.1']
    #allocation7 [shape = 'u8[1024]{0}', space=vmem, size = 0x400, scoped, tag = 'output window, operand 0']
    #allocation8 [shape = 'u8[1024]{0}', space=vmem, size = 0x400, scoped, tag = 'output window, operand 1']
    #allocation9 [shape = 's32[2]{0}', space=sflag, size = 0x8, scoped, tag = 'scoped memory for tpu_custom_call.1']
    %9 = vsyncpa [#allocation3], 0
    %s10 = scalar_lea.sflag [#allocation3], 1
    %11 = vsyncpa %s10, 0
    %12 = vsyncpa [#allocation6], 0
    %s13 = scalar_lea.sflag [#allocation6], 1
    %14 = vsyncpa %s13, 0
    %15 = vsyncpa [#allocation4], 0
    %s16 = scalar_lea.sflag [#allocation4], 1
    %17 = vsyncpa %s16, 0
    %18 = vsyncpa [#allocation9], 0
    %s19 = scalar_lea.sflag [#allocation9], 1
    %20 = vsyncpa %s19, 0
    loop: start=0, step=1, limit=4
    $region2: #{tpu_custom_call.1} parent=1 // loop_pre_header
      _
    $region3: #{tpu_custom_call.1} parent=1 // loop_header
      %s22 = sphi 0, %s26
      %p23 = scmp.ge.s32.totalorder %s22, 4
      %s29 = sphi 0, %s48
      %s30 = sphi 0, %s44
      %s31 = sphi 0, %s40
      %s32 = sphi 0, %s29
      %s33 = sphi 0, %s30
      %s34 = sphi 0, %s31
      %s35 = sphi 0, %s32
      %s36 = sphi 0, %s33
      %s37 = sphi 0, %s34
      %s55 = sphi 0, %s57
      %s58 = sphi 0, %s55
      %s59 = sphi 0, %s58
      %s75 = sphi 0, %s59
      %s85 = sphi 0, %s87
      %s88 = sphi 0, %s85
      %s89 = sphi 0, %s88
      %s105 = sphi 0, %s89
      %s113 = sphi 0, %s115
      %s116 = sphi 0, %s113
      %s117 = sphi 0, %s116
      %s133 = sphi 0, %s117
      %s141 = sphi 0, %s143
      %s144 = sphi 0, %s141
      %s145 = sphi 0, %s144
      %s161 = sphi 0, %s145
    $region4: #{tpu_custom_call.1} parent=1 // loop_header_branch
      %25 = sbr.rel (%p23) target = $region8
    $region5: #{tpu_custom_call.1} parent=1 // loop_body
      %s27 = ssub.s32 %s22, 1
      %s28 = ssub.s32 %s22, 2
      %s38 = sadd.s32 1, %s31
      %p39 = scmp.ge.s32.totalorder %s38, 1
      %s40 = scalar_select %p39, 0, %s38
      %s41 = sadd.s32 1, %s30
      %s42 = scalar_select %p39, %s41, %s30
      %p43 = scmp.ge.s32.totalorder %s42, 1
      %s44 = scalar_select %p43, 0, %s42
      %s45 = sadd.s32 1, %s29
      %s46 = scalar_select %p43, %s45, %s29
      %p47 = scmp.ge.s32.totalorder %s46, 2
      %s48 = scalar_select %p47, 0, %s46
      %s49 = sadd.s32 %s30, %s31
      %s50 = sadd.s32 %s44, %s40
      %s51 = ssub.s32 %s29, %s48
      %s52 = ssub.s32 %s49, %s50
      %s53 = sor.u32 %s51, %s52
      %p54 = scmp.eq.s32.totalorder %s53, 0
      %s56 = sadd.s32 %s55, 1
      %s57 = scalar_select %p54, %s55, %s56
      %p60 = pneg %p54
      %p61 = scmp.eq.s32.totalorder %s22, 1
      %p62 = por %p60, %p61
      %p63 = scmp.ne.s32.totalorder %s55, %s58
      %p64 = scmp.eq.s32.totalorder %s22, 0
      %p65 = por %p63, %p64
      %p66 = scmp.ne.s32.totalorder %s55, %s58
      %p67 = scmp.eq.s32.totalorder %s27, 1
      %p68 = por %p66, %p67
      %p69 = scmp.ne.s32.totalorder %s58, %s59
      %p70 = scmp.eq.s32.totalorder %s27, 0
      %p71 = por %p69, %p70
      %p72 = scmp.ne.s32.totalorder %s58, %s59
      %p73 = scmp.eq.s32.totalorder %s28, 1
      %p74 = por %p72, %p73
      %p76 = scmp.ne.s32.totalorder %s59, %s75
      %p77 = scmp.eq.s32.totalorder %s28, 0
      %p78 = por %p76, %p77
      %s79 = sadd.s32 %s30, %s31
      %s80 = sadd.s32 %s44, %s40
      %s81 = ssub.s32 %s29, %s48
      %s82 = ssub.s32 %s79, %s80
      %s83 = sor.u32 %s81, %s82
      %p84 = scmp.eq.s32.totalorder %s83, 0
      %s86 = sadd.s32 %s85, 1
      %s87 = scalar_select %p84, %s85, %s86
      %p90 = pneg %p84
      %p91 = scmp.eq.s32.totalorder %s22, 1
      %p92 = por %p90, %p91
      %p93 = scmp.ne.s32.totalorder %s85, %s88
      %p94 = scmp.eq.s32.totalorder %s22, 0
      %p95 = por %p93, %p94
      %p96 = scmp.ne.s32.totalorder %s85, %s88
      %p97 = scmp.eq.s32.totalorder %s27, 1
      %p98 = por %p96, %p97
      %p99 = scmp.ne.s32.totalorder %s88, %s89
      %p100 = scmp.eq.s32.totalorder %s27, 0
      %p101 = por %p99, %p100
      %p102 = scmp.ne.s32.totalorder %s88, %s89
      %p103 = scmp.eq.s32.totalorder %s28, 1
      %p104 = por %p102, %p103
      %p106 = scmp.ne.s32.totalorder %s89, %s105
      %p107 = scmp.eq.s32.totalorder %s28, 0
      %p108 = por %p106, %p107
      %s109 = ssub.s32 %s29, %s48
      %s110 = ssub.s32 %s30, %s44
      %s111 = sor.u32 %s109, %s110
      %p112 = scmp.eq.s32.totalorder %s111, 0
      %s114 = sadd.s32 %s113, 1
      %s115 = scalar_select %p112, %s113, %s114
      %p118 = pneg %p112
      %p119 = scmp.eq.s32.totalorder %s22, 1
      %p120 = por %p118, %p119
      %p121 = scmp.ne.s32.totalorder %s113, %s116
      %p122 = scmp.eq.s32.totalorder %s22, 0
      %p123 = por %p121, %p122
      %p124 = scmp.ne.s32.totalorder %s113, %s116
      %p125 = scmp.eq.s32.totalorder %s27, 1
      %p126 = por %p124, %p125
      %p127 = scmp.ne.s32.totalorder %s116, %s117
      %p128 = scmp.eq.s32.totalorder %s27, 0
      %p129 = por %p127, %p128
      %p130 = scmp.ne.s32.totalorder %s116, %s117
      %p131 = scmp.eq.s32.totalorder %s28, 1
      %p132 = por %p130, %p131
      %p134 = scmp.ne.s32.totalorder %s117, %s133
      %p135 = scmp.eq.s32.totalorder %s28, 0
      %p136 = por %p134, %p135
      %s137 = ssub.s32 %s29, %s48
      %s138 = ssub.s32 %s30, %s44
      %s139 = sor.u32 %s137, %s138
      %p140 = scmp.eq.s32.totalorder %s139, 0
      %s142 = sadd.s32 %s141, 1
      %s143 = scalar_select %p140, %s141, %s142
      %p146 = pneg %p140
      %p147 = scmp.eq.s32.totalorder %s22, 1
      %p148 = por %p146, %p147
      %p149 = scmp.ne.s32.totalorder %s141, %s144
      %p150 = scmp.eq.s32.totalorder %s22, 0
      %p151 = por %p149, %p150
      %p152 = scmp.ne.s32.totalorder %s141, %s144
      %p153 = scmp.eq.s32.totalorder %s27, 1
      %p154 = por %p152, %p153
      %p155 = scmp.ne.s32.totalorder %s144, %s145
      %p156 = scmp.eq.s32.totalorder %s27, 0
      %p157 = por %p155, %p156
      %p158 = scmp.ne.s32.totalorder %s144, %s145
      %p159 = scmp.eq.s32.totalorder %s28, 1
      %p160 = por %p158, %p159
      %p162 = scmp.ne.s32.totalorder %s145, %s161
      %p163 = scmp.eq.s32.totalorder %s28, 0
      %p164 = por %p162, %p163
      %p165 = scmp.le.s32.totalorder 1, %s22
      %p166 = scmp.lt.s32.totalorder %s22, 3
      %p167 = pnand %p165, %p166
      %p168 = pneg %p167
      // Predicated region
      $region9: #{tpu_custom_call.1} parent=5 // pred_check
        _
      $region10: #{tpu_custom_call.1} parent=5 // pred_check_branch
        %170 = sbr.rel (%p167) target = $region12
      $region11: #{tpu_custom_call.1} parent=5 // pred_region
        %s171 = ssub.s32 %s22, 1
      $region12: #{tpu_custom_call.1} parent=5 // pred_fallthru
        _
      %p172 = scmp.lt.s32.totalorder %s22, 2
      // Predicated region
      $region13: #{tpu_custom_call.1} parent=5 // pred_check
        %p173 = pneg %p172
      $region14: #{tpu_custom_call.1} parent=5 // pred_check_branch
        %175 = sbr.rel (%p173) target = $region16
      $region15: #{tpu_custom_call.1} parent=5 // pred_region
        // Predicated region
        $region17: #{tpu_custom_call.1} parent=15 // pred_check
          %p176 = pneg %p65
        $region18: #{tpu_custom_call.1} parent=15 // pred_check_branch
          %178 = sbr.rel (%p176) target = $region20
        $region19: #{tpu_custom_call.1} parent=15 // pred_region
          %s179 = sand.u32 %s55, 1
          %s180 = scalar_lea.sflag [#allocation3], %s179
          %s181 = sand.u32 %s55, 1
          %s182 = smul.addr %s181, 4
          %s183 = scalar_lea.vmem [#allocation2], %s182
          %s184 = sadd.s32 %s30, %s31
          %186 = vsyncadd %s180, 0
          %s187 = smul.addr %s29, 2
          %s188 = sadd.s32 %s184, %s187
          %s189 = smul.addr %s188, 2
          %s190 = scalar_lea.hbm %s0, %s189
          %s191 = sshll.u32 %s190, 4
          %s192 = int_to_ptr.hbm [resolvable:$true] %s191
          %s193 = sshll.u32 %s183, 4
          %s194 = int_to_ptr.vmem [resolvable:$true] %s193
          %199 = dma.hbm_to_vmem [thread:$0]  %s192, 64, %s194, %s180, 32, 32, 2
        $region20: #{tpu_custom_call.1} parent=15 // pred_fallthru
          _
        // Predicated region
        $region21: #{tpu_custom_call.1} parent=15 // pred_check
          %p200 = pneg %p95
        $region22: #{tpu_custom_call.1} parent=15 // pred_check_branch
          %202 = sbr.rel (%p200) target = $region24
        $region23: #{tpu_custom_call.1} parent=15 // pred_region
          %s203 = sand.u32 %s85, 1
          %s204 = scalar_lea.sflag [#allocation6], %s203
          %s205 = sand.u32 %s85, 1
          %s206 = smul.addr %s205, 2
          %s207 = scalar_lea.vmem [#allocation5], %s206
          %s208 = sadd.s32 %s30, %s31
          %210 = vsyncadd %s204, 0
          %s211 = sadd.s32 %s208, %s29
          %s212 = smul.addr %s211, 2
          %s213 = scalar_lea.hbm %s1, %s212
          %s215 = sshll.u32 %s213, 4
          %s216 = int_to_ptr.hbm [resolvable:$true] %s215
          %s217 = sshll.u32 %s207, 4
          %s218 = int_to_ptr.vmem [resolvable:$true] %s217
          %220 = dma.hbm_to_vmem [thread:$0]  %s216, 32, %s218, %s204
        $region24: #{tpu_custom_call.1} parent=15 // pred_fallthru
          _
      $region16: #{tpu_custom_call.1} parent=5 // pred_fallthru
        _
      %p221 = scmp.le.s32.totalorder 1, %s22
      %p222 = scmp.lt.s32.totalorder %s22, 3
      %p223 = pnand %p221, %p222
      %p224 = pneg %p223
      // Predicated region
      $region25: #{tpu_custom_call.1} parent=5 // pred_check
        _
      $region26: #{tpu_custom_call.1} parent=5 // pred_check_branch
        %226 = sbr.rel (%p223) target = $region28
      $region27: #{tpu_custom_call.1} parent=5 // pred_region
        %s227 = ssub.s32 %s22, 1
        %s228 = sand.u32 %s58, 1
        %s229 = scalar_lea.sflag [#allocation3], %s228
        %s230 = sand.u32 %s58, 1
        %s231 = smul.addr %s230, 4
        %s232 = scalar_lea.vmem [#allocation2], %s231
        // Predicated region
        $region29: #{tpu_custom_call.1} parent=27 // pred_check
          %p233 = pneg %p71
        $region30: #{tpu_custom_call.1} parent=27 // pred_check_branch
          %235 = sbr.rel (%p233) target = $region32
        $region31: #{tpu_custom_call.1} parent=27 // pred_region
          %237 = dma.done %s229, 64
        $region32: #{tpu_custom_call.1} parent=27 // pred_fallthru
          _
        %s238 = sand.u32 %s88, 1
        %s239 = scalar_lea.sflag [#allocation6], %s238
        %s240 = sand.u32 %s88, 1
        %s241 = smul.addr %s240, 2
        %s242 = scalar_lea.vmem [#allocation5], %s241
        // Predicated region
        $region33: #{tpu_custom_call.1} parent=27 // pred_check
          %p243 = pneg %p101
        $region34: #{tpu_custom_call.1} parent=27 // pred_check_branch
          %245 = sbr.rel (%p243) target = $region36
        $region35: #{tpu_custom_call.1} parent=27 // pred_region
          %247 = dma.done %s239, 32
        $region36: #{tpu_custom_call.1} parent=27 // pred_fallthru
          _
        %s248 = sand.u32 %s58, 1
        %s249 = scalar_lea.sflag [#allocation3], %s248
        %s250 = sand.u32 %s58, 1
        %s251 = smul.addr %s250, 4
        %s252 = scalar_lea.vmem [#allocation2], %s251
        %p253 = pneg %p71
        %p254 = pneg %p68
        %s255 = sand.u32 %s88, 1
        %s256 = scalar_lea.sflag [#allocation6], %s255
        %s257 = sand.u32 %s88, 1
        %s258 = smul.addr %s257, 2
        %s259 = scalar_lea.vmem [#allocation5], %s258
        %p260 = pneg %p101
        %p261 = pneg %p98
        %p262 = pneg %p129
        %p263 = pneg %p126
        %s264 = sand.u32 %s116, 1
        %s265 = scalar_lea.sflag [#allocation4], %s264
        %s266 = sand.u32 %s116, 1
        %s267 = scalar_lea.vmem [#allocation7], %s266
        %p268 = pneg %p157
        %p269 = pneg %p154
        %s270 = sand.u32 %s144, 1
        %s271 = scalar_lea.sflag [#allocation9], %s270
        %s272 = sand.u32 %s144, 1
        %s273 = scalar_lea.vmem [#allocation8], %s272
        %s274 = sadd.s32 %s33, %s34
        %s275 = sadd.s32 %s33, %s34
        %p276 = scmp.eq.s32.totalorder %s34, 0
        // Predicated region
        $region37: #{tpu_custom_call.1} parent=27 // pred_check
          %p277 = pneg %p276
        $region38: #{tpu_custom_call.1} parent=27 // pred_check_branch
          %279 = sbr.rel (%p277) target = $region40
        $region39: #{tpu_custom_call.1} parent=27 // pred_region
          %280 = vst [vmem:[%s267] sm:$0x1] 0.0
          %281 = vst [vmem:[%s273] sm:$0x1] 0.0
        $region40: #{tpu_custom_call.1} parent=27 // pred_fallthru
          _
        %v282 = vld [vmem:[%s242] sm:$0x3]
        %v283 = vld [vmem:[%s232] sm:$0x3]
        %s284 = scalar_lea.vmem %s232, 2 [#allocation2]
        %v285 = vld [vmem:[%s284] sm:$0x3]
        %v286 = vsub.f32 %v285, %v283
        %vm287 = vcmp.eq.s32.totalorder %v282, 1
        %v288 = vsub.f32 0.0, %v286
        %v289 = vsel %vm287, %v286, %v288
        %v290 = vsub.f32 0.0, %v289
        %v291 = vmul.f32 %v290, 1.442695
        %v292 = vpow.pop %v291
        %v293 = vadd.f32 %v292, 1.0
        %v294 = vrcp.pop %v293
        %v295 = vmul.f32 %v293, %v294
        %v296 = vsub.f32 1.0, %v295
        %v297 = vmul.f32 %v294, %v296
        %v298 = vadd.f32 %v294, %v297
        %vm299 = vweird.f32 %v293
        %vm300 = vweird.f32 %v294
        %vm301 = vmor %vm299, %vm300
        %v302 = vsel %vm301, %v294, %v298
        %v303 = vand.u32 2147483647, %v293
        %vm304 = vcmp.eq.f32.partialorder %v303, 8.507059e+37
        %v305 = vand.u32 %v293, 2147483648
        %v306 = vor.u32 1.1754944e-38, %v305
        %v307 = vsel %vm304, %v306, %v302
        %v308 = vadd.f32 %v307, 1e-10
        %v309 = vsel %vm287, 1, 0
        %v310 = vcvt.s32.f32 %v309
        %v311 = vmul.f32 %v310, -0.20000002
        %v312 = vadd.f32 %v311, 0.6
        %v313 = vlog2.pop %v308
        %v314 = vmul.f32 %v313, 0.6931472
        %v315 = vsub.f32 1.0, %v308
        %v316 = vmul.f32 %v315, %v315
        %v317 = vmul.f32 %v316, %v314
        %v318 = vsub.f32 0.0, %v317
        %v319 = vld [vmem:[%s267] sm:$0x1]
        %vm320 = vcmask 1041408
        %v321 = vsel %vm320, %v312, 0.0
        %v322 = vrot.slane %v321, 4
        %v323 = vadd.f32 %v321, %v322
        %v324 = vrot.slane %v323, 2
        %v325 = vadd.f32 %v323, %v324
        %v326 = vrot.slane %v325, 1
        %v327 = vadd.f32 %v325, %v326
        %v328 = vadd.f32 %v319, %v327
        %329 = vst [vmem:[%s267] sm:$0x1] %v328
        %v330 = vld [vmem:[%s273] sm:$0x1]
        %v331 = vsel %vm320, %v318, 0.0
        %v332 = vrot.slane %v331, 4
        %v333 = vadd.f32 %v331, %v332
        %v334 = vrot.slane %v333, 2
        %v335 = vadd.f32 %v333, %v334
        %v336 = vrot.slane %v335, 1
        %v337 = vadd.f32 %v335, %v336
        %v338 = vadd.f32 %v330, %v337
        %339 = vst [vmem:[%s273] sm:$0x1] %v338
        %s340 = sand.u32 %s116, 1
        %s341 = scalar_lea.sflag [#allocation4], %s340
        %s342 = sand.u32 %s116, 1
        %s343 = scalar_lea.vmem [#allocation7], %s342
        %s344 = sand.u32 %s144, 1
        %s345 = scalar_lea.sflag [#allocation9], %s344
        %s346 = sand.u32 %s144, 1
        %s347 = scalar_lea.vmem [#allocation8], %s346
        // Predicated region
        $region41: #{tpu_custom_call.1} parent=27 // pred_check
          %p348 = pneg %p126
        $region42: #{tpu_custom_call.1} parent=27 // pred_check_branch
          %350 = sbr.rel (%p348) target = $region44
        $region43: #{tpu_custom_call.1} parent=27 // pred_region
          %352 = vsyncadd %s341, 0
          %s353 = sadd.s32 %s33, %s32
          %s354 = scalar_lea.hbm %s2, %s353
          %s356 = sshll.u32 %s343, 4
          %s357 = int_to_ptr.vmem [resolvable:$true] %s356
          %s358 = sshll.u32 %s354, 4
          %s359 = int_to_ptr.hbm [resolvable:$true] %s358
          %361 = dma.vmem_to_hbm [thread:$0]  %s357, 16, %s359, %s341
        $region44: #{tpu_custom_call.1} parent=27 // pred_fallthru
          _
        // Predicated region
        $region45: #{tpu_custom_call.1} parent=27 // pred_check
          %p362 = pneg %p154
        $region46: #{tpu_custom_call.1} parent=27 // pred_check_branch
          %364 = sbr.rel (%p362) target = $region48
        $region47: #{tpu_custom_call.1} parent=27 // pred_region
          %366 = vsyncadd %s345, 0
          %s367 = sadd.s32 %s33, %s32
          %s368 = scalar_lea.hbm %s3, %s367
          %s370 = sshll.u32 %s347, 4
          %s371 = int_to_ptr.vmem [resolvable:$true] %s370
          %s372 = sshll.u32 %s368, 4
          %s373 = int_to_ptr.hbm [resolvable:$true] %s372
          %375 = dma.vmem_to_hbm [thread:$0]  %s371, 16, %s373, %s345
        $region48: #{tpu_custom_call.1} parent=27 // pred_fallthru
          _
      $region28: #{tpu_custom_call.1} parent=5 // pred_fallthru
        _
      %p376 = scmp.le.s32.totalorder 2, %s22
      // Predicated region
      $region49: #{tpu_custom_call.1} parent=5 // pred_check
        %p377 = pneg %p376
      $region50: #{tpu_custom_call.1} parent=5 // pred_check_branch
        %379 = sbr.rel (%p377) target = $region52
      $region51: #{tpu_custom_call.1} parent=5 // pred_region
        %s380 = ssub.s32 %s22, 2
        // Predicated region
        $region53: #{tpu_custom_call.1} parent=51 // pred_check
          %p381 = pneg %p132
        $region54: #{tpu_custom_call.1} parent=51 // pred_check_branch
          %383 = sbr.rel (%p381) target = $region56
        $region55: #{tpu_custom_call.1} parent=51 // pred_region
          %s384 = sand.u32 %s117, 1
          %s385 = scalar_lea.sflag [#allocation4], %s384
          %s386 = sand.u32 %s117, 1
          %s387 = scalar_lea.vmem [#allocation7], %s386
          %389 = dma.done %s385, 16
        $region56: #{tpu_custom_call.1} parent=51 // pred_fallthru
          _
        // Predicated region
        $region57: #{tpu_custom_call.1} parent=51 // pred_check
          %p390 = pneg %p160
        $region58: #{tpu_custom_call.1} parent=51 // pred_check_branch
          %392 = sbr.rel (%p390) target = $region60
        $region59: #{tpu_custom_call.1} parent=51 // pred_region
          %s393 = sand.u32 %s145, 1
          %s394 = scalar_lea.sflag [#allocation9], %s393
          %s395 = sand.u32 %s145, 1
          %s396 = scalar_lea.vmem [#allocation8], %s395
          %398 = dma.done %s394, 16
        $region60: #{tpu_custom_call.1} parent=51 // pred_fallthru
          _
      $region52: #{tpu_custom_call.1} parent=5 // pred_fallthru
        _
    $region6: #{tpu_custom_call.1} parent=1 // loop_footer
      %s26 = sadd.s32 1, %s22
    $region7: #{tpu_custom_call.1} parent=1 // loop_footer_branch
      %21 = sbr.rel target = $region3
    $region8: #{tpu_custom_call.1} parent=1 // loop_exit
      _
    %399 = vsyncpa [#allocation3], 1
    %s400 = scalar_lea.sflag [#allocation3], 1
    %401 = vsyncpa %s400, 1
    %402 = vsyncpa [#allocation6], 1
    %s403 = scalar_lea.sflag [#allocation6], 1
    %404 = vsyncpa %s403, 1
    %405 = vsyncpa [#allocation4], 1
    %s406 = scalar_lea.sflag [#allocation4], 1
    %407 = vsyncpa %s406, 1
    %408 = vsyncpa [#allocation9], 1
    %s409 = scalar_lea.sflag [#allocation9], 1
    %410 = vsyncpa %s409, 1

</llo_original>
